<compile_context>
chip_gen: v7x
topology: tpu7x:2x2x1
jax: 0.10.0
libtpu: 0.0.40
codegen_flags: <defaults>
</compile_context>

<pallas_src>
import jax
import jax.numpy as jnp
from jax.experimental import pallas as pl
from jax.experimental.pallas import tpu as pltpu


def _round_up(n: int, m: int) -> int:
    return (n + m - 1) // m * m


def _ltr_kernel(x_ref, w1_ref, b1_ref, w2_ref, b2_ref, o_ref):
    # ---- input_layer: Linear(D_in -> H) + ReLU ------------------------------
    # f32 operands, f32 accumulation. The kernel is HBM-bound at LTR shapes, so
    # MXU operand width is not the binding slot; no bf16 downcast.
    h = jnp.dot(x_ref[...], w1_ref[...], preferred_element_type=jnp.float32)
    h = jnp.maximum(h + b1_ref[...], 0.0)                  # bias + ReLU (VPU)

    # ---- output_layer: Linear(H -> out_dim) ---------------------------------
    # Plain h @ w2 -> (tile_m, out_dim). For out_dim == 1 this is a tiny masked
    # column store (rows*4 bytes total), cheaper than relayouting the f32
    # hidden tile every step for a lane-dense store.
    y = jnp.dot(h, w2_ref[...], preferred_element_type=jnp.float32)
    o_ref[...] = (y + b2_ref[...]).astype(o_ref.dtype)


def ltr_forward(x, w1, b1, w2, b2, *, tile_m=None,
                target_tile_bytes=2 << 20, vmem_budget_bytes=40 << 20):
    """LTRModel.forward.

    x : [B, S, D_in]; w1: [D_in, H]; b1: [1, H]; w2: [H, out_dim]; b2: [1, out_dim]
    Returns [B, S, out_dim] (dtype follows x).
    """
    B, S, D_in = x.shape
    H = w1.shape[1]
    out_dim = w2.shape[1]
    rows = B * S

    x2d = x.reshape(rows, D_in)            # free (contiguous)
    itemsize = x2d.dtype.itemsize

    if tile_m is None:
        # Bandwidth-driven tile: ~target_tile_bytes of x per grid step.
        tile_bw = _round_up(max(target_tile_bytes // max(D_in * itemsize, 1), 1), 128)
        # v7x megacore: keep >= 4 row tiles so both TensorCores get work.
        tile_split = _round_up(-(-rows // 4), 128)
        # VMEM cap: 2x double-buffered x block + 2x out block + f32 hidden
        # per row, plus the (double-buffered) weights, under the budget.
        per_row_bytes = 2 * D_in * itemsize + 2 * out_dim * itemsize + 4 * H
        params_bytes = 2 * 4 * (w1.size + b1.size + w2.size + b2.size)
        tile_cap = max(
            128,
            max(vmem_budget_bytes - params_bytes, 0) // per_row_bytes // 128 * 128,
        )
        # Never allocate blocks meaningfully larger than the input itself.
        rows_aligned = _round_up(rows, 8)
        tile_m = min(tile_bw, tile_split, tile_cap, rows_aligned)
    else:
        tile_m = _round_up(int(tile_m), 8)

    num_tiles = pl.cdiv(rows, tile_m)       # no padding: final block may be ragged

    cost = pl.CostEstimate(
        flops=2 * rows * H * (D_in + out_dim),
        transcendentals=0,
        bytes_accessed=(
            rows * D_in * itemsize
            + (w1.size * w1.dtype.itemsize + b1.size * b1.dtype.itemsize
               + w2.size * w2.dtype.itemsize + b2.size * b2.dtype.itemsize)
            + rows * out_dim * itemsize
        ),
    )

    out2d = pl.pallas_call(
        _ltr_kernel,
        out_shape=jax.ShapeDtypeStruct((rows, out_dim), x.dtype),
        grid=(num_tiles,),
        in_specs=[
            pl.BlockSpec((tile_m, D_in), lambda i: (i, 0)),   # x tile (pipelined)
            pl.BlockSpec((D_in, H), lambda i: (0, 0)),        # w1 (VMEM-resident)
            pl.BlockSpec((1, H), lambda i: (0, 0)),           # b1
            pl.BlockSpec((H, out_dim), lambda i: (0, 0)),     # w2
            pl.BlockSpec((1, out_dim), lambda i: (0, 0)),     # b2
        ],
        out_specs=pl.BlockSpec((tile_m, out_dim), lambda i: (i, 0)),
        compiler_params=pltpu.CompilerParams(
            # v7x: shard row tiles across 2 TCs (no-op on v5e/v6e).
            dimension_semantics=("parallel",),
            # Explicit scoped-VMEM limit: v5e's default is 16 MiB, v6e/v7x 32 MiB;
            # 48 MiB keeps headroom under v7x's 64 MiB physical VMEM per TC.
            vmem_limit_bytes=48 << 20,
        ),
        cost_estimate=cost,
    )(x2d, w1, b1, w2, b2)

    return out2d.reshape(B, S, out_dim)


def _reference(x, w1, b1, w2, b2):
    """Pure-f32 reference of the PyTorch module semantics."""
    hp = jax.lax.Precision.HIGHEST
    h = jnp.maximum(jnp.einsum("bsd,dh->bsh", x, w1, precision=hp) + b1[0], 0.0)
    return jnp.einsum("bsh,ho->bso", h, w2, precision=hp) + b2[0]


if __name__ == "__main__":
    # Small shapes consistent with LTR forward: [batch, slate_length, input_dim]
    B, S, D_in, H, OUT = 2, 8, 32, 32, 1

    key = jax.random.PRNGKey(0)
    kx, k1, kb1, k2, kb2 = jax.random.split(key, 5)

    x = jax.random.normal(kx, (B, S, D_in), dtype=jnp.float32)

    # Deterministic parameter init (synthetic; approx. PyTorch Linear scaling)
    w1 = jax.random.normal(k1, (D_in, H), dtype=jnp.float32) * (1.0 / jnp.sqrt(D_in))
    b1 = jax.random.normal(kb1, (1, H), dtype=jnp.float32) * 0.01
    w2 = jax.random.normal(k2, (H, OUT), dtype=jnp.float32) * (1.0 / jnp.sqrt(H))
    b2 = jax.random.normal(kb2, (1, OUT), dtype=jnp.float32) * 0.01

    out = ltr_forward(x, w1, b1, w2, b2)
    jax.block_until_ready(out)

    ref = _reference(x, w1, b1, w2, b2)
    assert out.shape == (B, S, OUT)
    # The kernel's data path is f32 end-to-end; the tolerance only covers the
    # MXU's default contracting precision (which may use bf16 passes for f32
    # operands depending on generation/compiler defaults).
    assert jnp.allclose(out, ref, atol=5e-2, rtol=5e-2), (
        float(jnp.max(jnp.abs(out - ref)))
    )

    # Ragged-tail check: rows not a multiple of the tile -> partial final block
    # (verifies that tail rows never contaminate or get stored).
    x_ragged = jax.random.normal(kx, (3, 7, D_in), dtype=jnp.float32)
    out_r = ltr_forward(x_ragged, w1, b1, w2, b2, tile_m=8)
    jax.block_until_ready(out_r)
    ref_r = _reference(x_ragged, w1, b1, w2, b2)
    assert out_r.shape == (3, 7, OUT)
    assert jnp.allclose(out_r, ref_r, atol=5e-2, rtol=5e-2), (
        float(jnp.max(jnp.abs(out_r - ref_r)))
    )

    print("KERNEL_OK")
</pallas_src>

<mosaic_0001>
module attributes {stable_mosaic.version = 11 : i64} {
  func.func @_ltr_kernel(%arg0: i32, %arg1: memref<16x32xf32, #tpu.memory_space<vmem>>, %arg2: memref<32x32xf32, #tpu.memory_space<vmem>>, %arg3: memref<1x32xf32, #tpu.memory_space<vmem>>, %arg4: memref<32x1xf32, #tpu.memory_space<vmem>>, %arg5: memref<1x1xf32, #tpu.memory_space<vmem>>, %arg6: memref<16x1xf32, #tpu.memory_space<vmem>>) attributes {dimension_semantics = [#tpu.dimension_semantics<parallel>], iteration_bounds = array<i64: 1>, scalar_prefetch = 0 : i64, scratch_operands = 0 : i64, tpu.core_type = #tpu.core_type<tc>, window_params = [{transform_indices = @transform_0, window_bounds = array<i64: 16, 32>}, {pipeline_mode = #tpu.pipeline_mode<synchronous>, transform_indices = @transform_1, window_bounds = array<i64: 32, 32>}, {pipeline_mode = #tpu.pipeline_mode<synchronous>, transform_indices = @transform_2, window_bounds = array<i64: 1, 32>}, {pipeline_mode = #tpu.pipeline_mode<synchronous>, transform_indices = @transform_3, window_bounds = array<i64: 32, 1>}, {pipeline_mode = #tpu.pipeline_mode<synchronous>, transform_indices = @transform_4, window_bounds = array<i64: 1, 1>}, {transform_indices = @transform_5, window_bounds = array<i64: 16, 1>}]} {
    %c0 = arith.constant 0 : index
    %c0_0 = arith.constant 0 : index
    %0 = vector.load %arg1[%c0, %c0_0] : memref<16x32xf32, #tpu.memory_space<vmem>>, vector<16x32xf32>
    %c0_1 = arith.constant 0 : index
    %c0_2 = arith.constant 0 : index
    %1 = vector.load %arg2[%c0_1, %c0_2] : memref<32x32xf32, #tpu.memory_space<vmem>>, vector<32x32xf32>
    %cst = arith.constant dense<0.000000e+00> : vector<16x32xf32>
    %2 = tpu.matmul %0, %1, %cst {dimension_numbers = #tpu.dot_dimension_numbers<[1], [0], [0], [1], [0, 0, 1, 1], [], []>} : vector<16x32xf32>, vector<32x32xf32>, vector<16x32xf32> -> vector<16x32xf32>
    %c0_3 = arith.constant 0 : index
    %c0_4 = arith.constant 0 : index
    %3 = vector.load %arg3[%c0_3, %c0_4] : memref<1x32xf32, #tpu.memory_space<vmem>>, vector<1x32xf32>
    %4 = vector.broadcast %3 : vector<1x32xf32> to vector<16x32xf32>
    %5 = arith.addf %2, %4 : vector<16x32xf32>
    %cst_5 = arith.constant 0.000000e+00 : f32
    %6 = vector.broadcast %cst_5 : f32 to vector<16x32xf32>
    %7 = arith.maximumf %5, %6 : vector<16x32xf32>
    %c0_6 = arith.constant 0 : index
    %c0_7 = arith.constant 0 : index
    %8 = vector.load %arg4[%c0_6, %c0_7] : memref<32x1xf32, #tpu.memory_space<vmem>>, vector<32x1xf32>
    %cst_8 = arith.constant dense<0.000000e+00> : vector<16x1xf32>
    %9 = tpu.matmul %7, %8, %cst_8 {dimension_numbers = #tpu.dot_dimension_numbers<[1], [0], [0], [1], [0, 0, 1, 1], [], []>} : vector<16x32xf32>, vector<32x1xf32>, vector<16x1xf32> -> vector<16x1xf32>
    %c0_9 = arith.constant 0 : index
    %c0_10 = arith.constant 0 : index
    %10 = vector.load %arg5[%c0_9, %c0_10] : memref<1x1xf32, #tpu.memory_space<vmem>>, vector<1x1xf32>
    %11 = vector.broadcast %10 : vector<1x1xf32> to vector<16x1xf32>
    %12 = arith.addf %9, %11 : vector<16x1xf32>
    %c0_11 = arith.constant 0 : index
    %c0_12 = arith.constant 0 : index
    %13 = vector.load %arg6[%c0_11, %c0_12] : memref<16x1xf32, #tpu.memory_space<vmem>>, vector<16x1xf32>
    tpu.vector_store %arg6[%c0_11, %c0_12], %12 {strides = array<i32>} : memref<16x1xf32, #tpu.memory_space<vmem>>, vector<16x1xf32>,
    return
  }
  func.func @transform_0(%arg0: i32) -> (i32, i32) {
    %c0_i32 = arith.constant 0 : i32
    %c0_i32_0 = arith.constant 0 : i32
    return %arg0, %c0_i32 : i32, i32
  }
  func.func @transform_1(%arg0: i32) -> (i32, i32) {
    %c0_i32 = arith.constant 0 : i32
    %c0_i32_0 = arith.constant 0 : i32
    %c0_i32_1 = arith.constant 0 : i32
    return %c0_i32, %c0_i32_0 : i32, i32
  }
  func.func @transform_2(%arg0: i32) -> (i32, i32) {
    %c0_i32 = arith.constant 0 : i32
    %c0_i32_0 = arith.constant 0 : i32
    %c0_i32_1 = arith.constant 0 : i32
    return %c0_i32, %c0_i32_0 : i32, i32
  }
  func.func @transform_3(%arg0: i32) -> (i32, i32) {
    %c0_i32 = arith.constant 0 : i32
    %c0_i32_0 = arith.constant 0 : i32
    %c0_i32_1 = arith.constant 0 : i32
    return %c0_i32, %c0_i32_0 : i32, i32
  }
  func.func @transform_4(%arg0: i32) -> (i32, i32) {
    %c0_i32 = arith.constant 0 : i32
    %c0_i32_0 = arith.constant 0 : i32
    %c0_i32_1 = arith.constant 0 : i32
    return %c0_i32, %c0_i32_0 : i32, i32
  }
  func.func @transform_5(%arg0: i32) -> (i32, i32) {
    %c0_i32 = arith.constant 0 : i32
    %c0_i32_0 = arith.constant 0 : i32
    return %arg0, %c0_i32 : i32, i32
  }
}

</mosaic_0001>

<llo_original>
// kernel: tpu_custom_call.1
$region0: #{tpu_custom_call.1}
  #allocation0 [shape = 'u32[]', space=smem, size = 0x4, offset = 0x4, fixed_abs, tag = 'smem constant byte address 0x4 - core index']
  #allocation1 [shape = 'u32[144,128]{1,0:T(1,128)}', space=vmem, size = 0x12000, scoped, tag = 'internal scratch']
  #allocation2 [shape = 'f32[1,1]{1,0:T(1,128)S(1)}', space=vmem, size = 0x200, scoped, tag = 'scoped memory for tpu_custom_call.1']
  %s0 = inlined_call_operand.hbm [shape: f32[16,32], index: 0, kind: input, shape index: {}]
  %s1 = inlined_call_operand.vmem [shape: f32[32,32], index: 1, kind: input, shape index: {}]
  %s2 = inlined_call_operand.vmem [shape: f32[1,32], index: 2, kind: input, shape index: {}]
  %s3 = inlined_call_operand.vmem [shape: f32[32,1], index: 3, kind: input, shape index: {}]
  %s4 = inlined_call_operand.<no memory space> [shape: f32[1,1], index: 4, kind: input, shape index: {}]
  %s5 = inlined_call_operand.vmem [shape: f32[16,1], index: 5, kind: output, shape index: {}]
  %s6 = sld [smem:[#allocation0]]
  $region34: #{tpu_custom_call.1} parent=0
    _
  %s8 = ssub.s32 1, %s6
  %s9 = scalar_select 0, %s8, %s6
  %v10 = vstv %s4
  %11 = vst [vmem:[#allocation2] sm:$0x1] %v10
  $region1: #{tpu_custom_call.1} parent=0
    #allocation3 [shape = 'u8[8192]{0}', space=vmem, size = 0x2000, scoped, tag = 'input window, operand 0, single buffered']
    #allocation4 [shape = 's32[1]{0}', space=sflag, size = 0x4, scoped, tag = 'scoped memory for tpu_custom_call.1']
    %12 = vsyncpa [#allocation4], 0
    // Predicated region
    $region2: #{tpu_custom_call.1} parent=1 // pred_check
      _
    $region3: #{tpu_custom_call.1} parent=1 // pred_check_branch
      %14 = sbr.rel (0) target = $region5
    $region4: #{tpu_custom_call.1} parent=1 // pred_region
      %s16 = ssub.s32 256, 256
      %17 = vsyncadd [#allocation4], %s16
      %s18 = sshll.u32 [#allocation3], 4
      %s19 = int_to_ptr.vmem [resolvable:$true] %s18
      %24 = dma.hbm_to_vmem [thread:$0]  %s0, 256, %s19, [#allocation4], 128, 128, 8
    $region5: #{tpu_custom_call.1} parent=1 // pred_fallthru
      _
    // Predicated region
    $region6: #{tpu_custom_call.1} parent=1 // pred_check
      _
    $region7: #{tpu_custom_call.1} parent=1 // pred_check_branch
      %26 = sbr.rel (0) target = $region9
    $region8: #{tpu_custom_call.1} parent=1 // pred_region
      _
    $region9: #{tpu_custom_call.1} parent=1 // pred_fallthru
      _
    // Predicated region
    $region10: #{tpu_custom_call.1} parent=1 // pred_check
      _
    $region11: #{tpu_custom_call.1} parent=1 // pred_check_branch
      %28 = sbr.rel (0) target = $region13
    $region12: #{tpu_custom_call.1} parent=1 // pred_region
      _
    $region13: #{tpu_custom_call.1} parent=1 // pred_fallthru
      _
    // Predicated region
    $region14: #{tpu_custom_call.1} parent=1 // pred_check
      _
    $region15: #{tpu_custom_call.1} parent=1 // pred_check_branch
      %30 = sbr.rel (0) target = $region17
    $region16: #{tpu_custom_call.1} parent=1 // pred_region
      _
    $region17: #{tpu_custom_call.1} parent=1 // pred_fallthru
      _
    // Predicated region
    $region18: #{tpu_custom_call.1} parent=1 // pred_check
      _
    $region19: #{tpu_custom_call.1} parent=1 // pred_check_branch
      %32 = sbr.rel (0) target = $region21
    $region20: #{tpu_custom_call.1} parent=1 // pred_region
      _
    $region21: #{tpu_custom_call.1} parent=1 // pred_fallthru
      _
    // Predicated region
    $region22: #{tpu_custom_call.1} parent=1 // pred_check
      _
    $region23: #{tpu_custom_call.1} parent=1 // pred_check_branch
      %34 = sbr.rel (0) target = $region25
    $region24: #{tpu_custom_call.1} parent=1 // pred_region
      %35 = dma.done [#allocation4], 256
    $region25: #{tpu_custom_call.1} parent=1 // pred_fallthru
      _
    %v36 = vld [vmem:[#allocation3] sm:$0xff]
    %v37 = vld [vmem:[#allocation3 + $0x8] sm:$0xff]
    %v38 = vld [vmem:[%s1] sm:$0xff]
    %v39 = vld [vmem:[%s1 + $0x8] sm:$0xff]
    %v40 = vld [vmem:[%s1 + $0x10] sm:$0xff]
    %v41 = vld [vmem:[%s1 + $0x18] sm:$0xff]
    %v42 = vld [vmem:[%s2] sm:$0x1]
    %v44 = vlaneseq
    %v45 = vshrl.u32 %v44, 7
    %v46 = vsub.s32 0, %v45
    %v47 = vrot.slane %v42, %v46
    %vm49 = vcmask 261120
    %v51 = vsel %vm49, %v36, 0
    %v54 = vsel %vm49, %v37, 0
    %56 = vmatprep.subr.mxu0 0.0
    %57 = vmatpush1.msra.mxu0 %v38
    %58 = vmatprep.subr.mxu0 0.0
    %59 = vmatpush1.msra.mxu0 %v39
    %60 = vmatprep.subr.mxu0 0.0
    %61 = vmatpush1.msra.mxu0 %v40
    %62 = vmatprep.subr.mxu0 0.0
    %63 = vmatpush1.msra.mxu0 %v41
    %64 = vmatprep.subr.mxu0 0.0
    %65 = vmatpush1.msra.mxu0 0.0
    %66 = vmatprep.subr.mxu0 0.0
    %67 = vmatpush1.msra.mxu0 0.0
    %68 = vmatprep.subr.mxu0 0.0
    %69 = vmatpush1.msra.mxu0 0.0
    %70 = vmatprep.subr.mxu0 0.0
    %71 = vmatpush1.msra.mxu0 0.0
    %72 = vmatprep.subr.mxu0 0.0
    %73 = vmatpush1.msra.mxu0 0.0
    %74 = vmatprep.subr.mxu0 0.0
    %75 = vmatpush1.msra.mxu0 0.0
    %76 = vmatprep.subr.mxu0 0.0
    %77 = vmatpush1.msra.mxu0 0.0
    %78 = vmatprep.subr.mxu0 0.0
    %79 = vmatpush1.msra.mxu0 0.0
    %80 = vmatprep.subr.mxu0 0.0
    %81 = vmatpush1.msra.mxu0 0.0
    %82 = vmatprep.subr.mxu0 0.0
    %83 = vmatpush1.msra.mxu0 0.0
    %84 = vmatprep.subr.mxu0 0.0
    %85 = vmatpush1.msra.mxu0 0.0
    %86 = vmatprep.subr.mxu0 0.0
    %87 = vmatpush1.msra.mxu0 0.0
    %88 = vmatprep.subr.mxu0 0.0
    %89 = vmatpush1.msra.mxu0 0.0
    %90 = vmatprep.subr.mxu0 0.0
    %91 = vmatpush1.msra.mxu0 0.0
    %92 = vmatprep.subr.mxu0 0.0
    %93 = vmatpush1.msra.mxu0 0.0
    %94 = vmatprep.subr.mxu0 0.0
    %95 = vmatpush1.msra.mxu0 0.0
    %96 = vmatprep.subr.mxu0 0.0
    %97 = vmatpush1.msra.mxu0 0.0
    %98 = vmatprep.subr.mxu0 0.0
    %99 = vmatpush1.msra.mxu0 0.0
    %100 = vmatprep.subr.mxu0 0.0
    %101 = vmatpush1.msra.mxu0 0.0
    %102 = vmatprep.subr.mxu0 0.0
    %103 = vmatpush1.msra.mxu0 0.0
    %104 = vmatprep.subr.mxu0 0.0
    %105 = vmatpush1.msra.mxu0 0.0
    %106 = vmatprep.subr.mxu0 0.0
    %107 = vmatpush1.msra.mxu0 0.0
    %108 = vmatprep.subr.mxu0 0.0
    %109 = vmatpush1.msra.mxu0 0.0
    %110 = vmatprep.subr.mxu0 0.0
    %111 = vmatpush1.msra.mxu0 0.0
    %112 = vmatprep.subr.mxu0 0.0
    %113 = vmatpush1.msra.mxu0 0.0
    %114 = vmatprep.subr.mxu0 0.0
    %115 = vmatpush1.msra.mxu0 0.0
    %116 = vmatprep.subr.mxu0 0.0
    %117 = vmatpush1.msra.mxu0 0.0
    %118 = vmatprep.subr.mxu0 0.0
    %119 = vmatpush1.msra.mxu0 0.0
    %120 = vmatprep.mubr.f32.mxu0 0.0
    %121 = vmatmul.mubr.f32.gmra.mrb[0].mxu0 %v51
    %v122 = vpop.f32.mrb[0].mxu0
    %v123 = vadd.f32 %v47, %v122
    %v124 = vpop.f32.mrb[0].mxu0
    %125 = vmatprep.mubr.f32.mxu0 0.0
    %126 = vmatmul.mubr.f32.gmra.mrb[0].mxu0 %v54
    %v127 = vpop.f32.mrb[0].mxu0
    %v128 = vadd.f32 %v47, %v127
    %v129 = vpop.f32.mrb[0].mxu0
    %130 = vdwg.mxu0
    %v131 = vmax.f32 %v123, 0.0
    %v132 = vmax.f32 %v128, 0.0
    %v133 = vld [vmem:[%s3] sm:$0xff]
    %v134 = vld [vmem:[%s3 + $0x8] sm:$0xff]
    %v135 = vld [vmem:[%s3 + $0x10] sm:$0xff]
    %v136 = vld [vmem:[%s3 + $0x18] sm:$0xff]
    %v137 = vld [vmem:[#allocation2] sm:$0x1]
    %v139 = vlaneseq
    %v140 = vshrl.u32 %v139, 7
    %v141 = vsub.s32 0, %v140
    %v142 = vrot.slane %v137, %v141
    %v145 = vsel %vm49, %v131, 0
    %v148 = vsel %vm49, %v132, 0
    %150 = vmatprep.subr.mxu0 0.0
    %151 = vmatpush1.msra.mxu0 %v133
    %152 = vmatprep.subr.mxu0 0.0
    %153 = vmatpush1.msra.mxu0 %v134
    %154 = vmatprep.subr.mxu0 0.0
    %155 = vmatpush1.msra.mxu0 %v135
    %156 = vmatprep.subr.mxu0 0.0
    %157 = vmatpush1.msra.mxu0 %v136
    %158 = vmatprep.subr.mxu0 0.0
    %159 = vmatpush1.msra.mxu0 0.0
    %160 = vmatprep.subr.mxu0 0.0
    %161 = vmatpush1.msra.mxu0 0.0
    %162 = vmatprep.subr.mxu0 0.0
    %163 = vmatpush1.msra.mxu0 0.0
    %164 = vmatprep.subr.mxu0 0.0
    %165 = vmatpush1.msra.mxu0 0.0
    %166 = vmatprep.subr.mxu0 0.0
    %167 = vmatpush1.msra.mxu0 0.0
    %168 = vmatprep.subr.mxu0 0.0
    %169 = vmatpush1.msra.mxu0 0.0
    %170 = vmatprep.subr.mxu0 0.0
    %171 = vmatpush1.msra.mxu0 0.0
    %172 = vmatprep.subr.mxu0 0.0
    %173 = vmatpush1.msra.mxu0 0.0
    %174 = vmatprep.subr.mxu0 0.0
    %175 = vmatpush1.msra.mxu0 0.0
    %176 = vmatprep.subr.mxu0 0.0
    %177 = vmatpush1.msra.mxu0 0.0
    %178 = vmatprep.subr.mxu0 0.0
    %179 = vmatpush1.msra.mxu0 0.0
    %180 = vmatprep.subr.mxu0 0.0
    %181 = vmatpush1.msra.mxu0 0.0
    %182 = vmatprep.subr.mxu0 0.0
    %183 = vmatpush1.msra.mxu0 0.0
    %184 = vmatprep.subr.mxu0 0.0
    %185 = vmatpush1.msra.mxu0 0.0
    %186 = vmatprep.subr.mxu0 0.0
    %187 = vmatpush1.msra.mxu0 0.0
    %188 = vmatprep.subr.mxu0 0.0
    %189 = vmatpush1.msra.mxu0 0.0
    %190 = vmatprep.subr.mxu0 0.0
    %191 = vmatpush1.msra.mxu0 0.0
    %192 = vmatprep.subr.mxu0 0.0
    %193 = vmatpush1.msra.mxu0 0.0
    %194 = vmatprep.subr.mxu0 0.0
    %195 = vmatpush1.msra.mxu0 0.0
    %196 = vmatprep.subr.mxu0 0.0
    %197 = vmatpush1.msra.mxu0 0.0
    %198 = vmatprep.subr.mxu0 0.0
    %199 = vmatpush1.msra.mxu0 0.0
    %200 = vmatprep.subr.mxu0 0.0
    %201 = vmatpush1.msra.mxu0 0.0
    %202 = vmatprep.subr.mxu0 0.0
    %203 = vmatpush1.msra.mxu0 0.0
    %204 = vmatprep.subr.mxu0 0.0
    %205 = vmatpush1.msra.mxu0 0.0
    %206 = vmatprep.subr.mxu0 0.0
    %207 = vmatpush1.msra.mxu0 0.0
    %208 = vmatprep.subr.mxu0 0.0
    %209 = vmatpush1.msra.mxu0 0.0
    %210 = vmatprep.subr.mxu0 0.0
    %211 = vmatpush1.msra.mxu0 0.0
    %212 = vmatprep.subr.mxu0 0.0
    %213 = vmatpush1.msra.mxu0 0.0
    %214 = vmatprep.mubr.f32.mxu0 0.0
    %215 = vmatmul.mubr.f32.gmra.mrb[0].mxu0 %v145
    %v216 = vpop.f32.mrb[0].mxu0
    %v217 = vadd.f32 %v142, %v216
    %v218 = vpop.f32.mrb[0].mxu0
    %219 = vmatprep.mubr.f32.mxu0 0.0
    %220 = vmatmul.mubr.f32.gmra.mrb[0].mxu0 %v148
    %v221 = vpop.f32.mrb[0].mxu0
    %v222 = vadd.f32 %v142, %v221
    %v223 = vpop.f32.mrb[0].mxu0
    %224 = vdwg.mxu0
    %vm225 = vcmask 7168
    %226 = vst.msk [vmem:[%s5] sm:$0xff] %vm225, %v217
    %227 = vst.msk [vmem:[%s5 + $0x8] sm:$0xff] %vm225, %v222
    // Predicated region
    $region26: #{tpu_custom_call.1} parent=1 // pred_check
      _
    $region27: #{tpu_custom_call.1} parent=1 // pred_check_branch
      %229 = sbr.rel (0) target = $region29
    $region28: #{tpu_custom_call.1} parent=1 // pred_region
      _
    $region29: #{tpu_custom_call.1} parent=1 // pred_fallthru
      _
    // Predicated region
    $region30: #{tpu_custom_call.1} parent=1 // pred_check
      _
    $region31: #{tpu_custom_call.1} parent=1 // pred_check_branch
      %231 = sbr.rel (0) target = $region33
    $region32: #{tpu_custom_call.1} parent=1 // pred_region
      _
    $region33: #{tpu_custom_call.1} parent=1 // pred_fallthru
      _
    %232 = vsyncpa [#allocation4], 1

</llo_original>
